<compile_context>
chip_gen: v7x
topology: tpu7x:2x2x1
jax: 0.10.0
libtpu: 0.0.40
codegen_flags: <defaults>
</compile_context>

<pallas_src>
from functools import partial

import numpy as np

import jax
import jax.numpy as jnp
from jax.experimental import pallas as pl
from jax.experimental.pallas import tpu as pltpu


def gpt_embeddings_kernel(ids_ref,              # SMEM (t_pad,) int32 (scalar prefetch)
                          gamma_ref, beta_ref,  # VMEM (1, E), resident across grid
                          *refs,
                          eps, tm, n_inner, use_projector):
    if use_projector:
        proj_ref, emb_hbm, out_ref, gather_buf, sem = refs
    else:
        proj_ref = None
        emb_hbm, out_ref, gather_buf, sem = refs

    o = pl.program_id(0)          # outer ("parallel") token-block group
    i = pl.program_id(1)          # inner ("arbitrary") block within the group
    slot = i & 1

    def start_block_gather(blk, dst_slot):
        tok_base = blk * tm
        row_base = dst_slot * tm

        @pl.loop(0, tm)           # scf.for: no code bloat at large tm
        def _(r):
            tok = ids_ref[tok_base + r]
            pltpu.make_async_copy(emb_hbm.at[tok],
                                  gather_buf.at[row_base + r],
                                  sem.at[dst_slot]).start()

    def wait_block_gather(dst_slot):
        # The tm row copies each signaled sem[dst_slot] with E*itemsize bytes;
        # one wait sized for the whole (tm, E) slab covers all of them.
        row_base = pl.multiple_of(dst_slot * tm, 8)
        pltpu.make_async_copy(emb_hbm.at[pl.ds(0, tm)],
                              gather_buf.at[pl.ds(row_base, tm)],
                              sem.at[dst_slot]).wait()

    # Prologue: the first inner step of each outer group fetches its own block.
    @pl.when(i == 0)
    def _():
        start_block_gather(o * n_inner, 0)

    # Prefetch next inner block into the other slot before waiting/computing.
    @pl.when(i + 1 < n_inner)
    def _():
        start_block_gather(o * n_inner + i + 1, (i + 1) & 1)

    wait_block_gather(slot)

    row0 = pl.multiple_of(slot * tm, 8)
    x = gather_buf[pl.ds(row0, tm), :].astype(jnp.float32)        # (tm, E), f32 math

    # One-pass LayerNorm statistics over E (biased variance, like torch).
    mean = jnp.mean(x, axis=-1, keepdims=True)
    mean_sq = jnp.mean(x * x, axis=-1, keepdims=True)
    var = mean_sq - mean * mean
    xn = (x - mean) * jax.lax.rsqrt(var + eps)
    xn = xn * gamma_ref[...].astype(jnp.float32) + beta_ref[...].astype(jnp.float32)

    E = xn.shape[-1]
    H = out_ref.shape[-1]
    if use_projector:
        # Real (non-identity) E -> H projection: bf16 x bf16 on the MXU, f32 acc.
        out_ref[...] = jnp.dot(xn.astype(jnp.bfloat16), proj_ref[...],
                               preferred_element_type=jnp.float32
                               ).astype(out_ref.dtype)
    elif H > E:
        # projector == eye(E, H): copy + zero-pad via two lane-dense slab stores
        # (at YaLM shapes E=2048 and H-E=8192 are both multiples of 128).
        out_ref[:, :E] = xn.astype(out_ref.dtype)
        out_ref[:, E:] = jnp.zeros((xn.shape[0], H - E), dtype=out_ref.dtype)
    else:
        out_ref[...] = xn.astype(out_ref.dtype)


def _projector_is_identity(projector, E, H):
    """Static host-side check (numpy); returns False for tracers/abstract values."""
    try:
        p = np.asarray(projector)
    except Exception:
        return False
    return p.shape == (E, H) and bool(np.array_equal(p, np.eye(E, H, dtype=p.dtype)))


def gpt_embeddings_forward(input_ids, emb_table, gamma, beta, projector=None,
                           *, eps=1e-5, block_tokens=None, out_dtype=jnp.float32,
                           projector_is_identity=None, outer_parallel=2):
    """input_ids: (B, S) int; emb_table: (V, E); gamma/beta: (E,);
    projector: (E, H) or None.  Returns (B, S, H) `out_dtype`."""
    B, S = input_ids.shape
    T = B * S
    V, E = emb_table.shape

    if projector is None:
        H = E
        use_projector = False
    else:
        H = projector.shape[1]
        if projector_is_identity is None:
            projector_is_identity = _projector_is_identity(projector, E, H)
        use_projector = not projector_is_identity

    # Token tile (multiple of 8 sublanes).  256 is a safe cross-generation
    # default: double-buffered gather (2*tm*E) + double-buffered output
    # (2*tm*H) fits v7x's 64 MiB VMEM at YaLM shapes; v5e/v6e callers can pass
    # block_tokens=512-1024 to amortize per-grid-step overhead further.
    if block_tokens is None:
        block_tokens = 256
    tm = max(8, min(int(block_tokens), pl.cdiv(T, 8) * 8))
    tm = pl.cdiv(tm, 8) * 8

    n_blocks = pl.cdiv(T, tm)
    n_outer = outer_parallel if n_blocks >= outer_parallel > 1 else 1
    n_inner = pl.cdiv(n_blocks, n_outer)
    t_pad = n_outer * n_inner * tm

    # NOTE: all ids live in SMEM via scalar prefetch; for very large B*S chunk
    # this call at the wrapper level (1-D SMEM pads to the next power of two).
    ids_flat = input_ids.reshape(T).astype(jnp.int32)
    if t_pad > T:
        ids_flat = jnp.concatenate([ids_flat, jnp.zeros((t_pad - T,), jnp.int32)])

    in_specs = [
        pl.BlockSpec((1, E), lambda o, i, ids: (0, 0)),   # gamma (resident)
        pl.BlockSpec((1, E), lambda o, i, ids: (0, 0)),   # beta  (resident)
    ]
    inputs = [gamma.reshape(1, E), beta.reshape(1, E)]
    if use_projector:
        # Non-identity projector: VMEM-resident bf16 tile.  (For very large E*H,
        # tile this over H with an extra grid axis instead of keeping it resident.)
        in_specs.append(pl.BlockSpec((E, H), lambda o, i, ids: (0, 0)))
        inputs.append(projector.astype(jnp.bfloat16))
    in_specs.append(pl.BlockSpec(memory_space=pl.ANY))     # table stays in HBM
    inputs.append(emb_table)

    # Scoped-VMEM budget from the actual working set (+ headroom), capped so it
    # also fits v7x's 64 MiB physical VMEM.
    emb_bytes = jnp.dtype(emb_table.dtype).itemsize
    out_bytes = jnp.dtype(out_dtype).itemsize
    need = 2 * tm * E * emb_bytes + 2 * tm * H * out_bytes + 4 * E * 4
    if use_projector:
        need += 2 * E * H * 2
    vmem_limit = int(min(max(need + (4 << 20), 16 << 20), 64 << 20))

    out = pl.pallas_call(
        partial(gpt_embeddings_kernel, eps=eps, tm=tm, n_inner=n_inner,
                use_projector=use_projector),
        out_shape=jax.ShapeDtypeStruct((t_pad, H), out_dtype),
        grid_spec=pltpu.PrefetchScalarGridSpec(
            num_scalar_prefetch=1,
            grid=(n_outer, n_inner),
            in_specs=in_specs,
            out_specs=pl.BlockSpec((tm, H),
                                   lambda o, i, ids: (o * n_inner + i, 0)),
            scratch_shapes=[
                pltpu.VMEM((2 * tm, E), emb_table.dtype),  # double-buffered rows
                pltpu.SemaphoreType.DMA((2,)),             # one aggregate sem per slot
            ]),
        compiler_params=pltpu.CompilerParams(
            dimension_semantics=("parallel", "arbitrary"),
            vmem_limit_bytes=vmem_limit),
    )(ids_flat, *inputs)

    return out[:T].reshape(B, S, H)


if __name__ == "__main__":
    # Small shapes consistent with the module (scaled-down GPTConfig):
    #   padded_vocab_size=128, embedding_size=32, hidden_size=64, eps=1e-5.
    B, S = 2, 8
    V, E, H = 128, 32, 64
    eps = 1e-5

    key = jax.random.PRNGKey(0)
    k_emb, k_ids, k_g, k_b = jax.random.split(key, 4)

    emb_table = 0.02 * jax.random.normal(k_emb, (V, E), jnp.float32)
    gamma = 1.0 + 0.1 * jax.random.normal(k_g, (E,), jnp.float32)
    beta = 0.1 * jax.random.normal(k_b, (E,), jnp.float32)
    projector = jnp.eye(E, H, dtype=jnp.float32)          # module's eye(E, H) buffer

    input_ids = jax.random.randint(k_ids, (B, S), 0, V, dtype=jnp.int32)

    out = gpt_embeddings_forward(input_ids, emb_table, gamma, beta, projector,
                                 eps=eps, block_tokens=8)   # 2 token blocks
    out = jax.block_until_ready(out)

    # Pure-JAX reference.
    x = emb_table[input_ids]                               # (B, S, E)
    mu = x.mean(-1, keepdims=True)
    var = ((x - mu) ** 2).mean(-1, keepdims=True)
    ref = ((x - mu) / jnp.sqrt(var + eps)) * gamma + beta
    ref = ref @ projector                                  # (B, S, H)

    assert out.shape == (B, S, H)
    assert out.dtype == jnp.float32
    assert jnp.allclose(out, ref, atol=1e-5, rtol=1e-5), float(jnp.abs(out - ref).max())

    print("KERNEL_OK")
</pallas_src>

<mosaic_0001>
module attributes {stable_mosaic.version = 11 : i64} {
  func.func @gpt_embeddings_kernel(%arg0: i32, %arg1: i32, %arg2: memref<16xi32, #tpu.memory_space<smem>>, %arg3: memref<1x32xf32, #tpu.memory_space<vmem>>, %arg4: memref<1x32xf32, #tpu.memory_space<vmem>>, %arg5: memref<128x32xf32, #tpu.memory_space<any>>, %arg6: memref<8x64xf32, #tpu.memory_space<vmem>>, %arg7: memref<16x32xf32, #tpu.memory_space<vmem>>, %arg8: memref<2x!tpu.dma_semaphore, #tpu.memory_space<semaphore_mem>>) attributes {dimension_semantics = [#tpu.dimension_semantics<parallel>, #tpu.dimension_semantics<arbitrary>], iteration_bounds = array<i64: 2, 1>, scalar_prefetch = 1 : i64, scratch_operands = 2 : i64, tpu.core_type = #tpu.core_type<tc>, window_params = [{pipeline_mode = #tpu.pipeline_mode<synchronous>, transform_indices = @transform_0, window_bounds = array<i64: 1, 32>}, {pipeline_mode = #tpu.pipeline_mode<synchronous>, transform_indices = @transform_1, window_bounds = array<i64: 1, 32>}, {}, {transform_indices = @transform_3, window_bounds = array<i64: 8, 64>}]} {
    %c1_i32 = arith.constant 1 : i32
    %0 = arith.andi %arg1, %c1_i32 : i32
    %c0_i32 = arith.constant 0 : i32
    %1 = arith.cmpi eq, %arg1, %c0_i32 : i32
    %2 = arith.extui %1 : i1 to i32
    %c0_i32_0 = arith.constant 0 : i32
    %3 = arith.cmpi ne, %2, %c0_i32_0 : i32
    scf.if %3 {
      %c1_i32_20 = arith.constant 1 : i32
      %45 = arith.muli %arg0, %c1_i32_20 : i32
      %c8_i32_21 = arith.constant 8 : i32
      %46 = arith.muli %45, %c8_i32_21 : i32
      %c0_i32_22 = arith.constant 0 : i32
      %c8_i32_23 = arith.constant 8 : i32
      %47 = arith.addi %c0_i32_22, %c8_i32_23 : i32
      %c1_i32_24 = arith.constant 1 : i32
      scf.for %arg9 = %c0_i32_22 to %47 step %c1_i32_24  : i32 {
        %c1_i32_26 = arith.constant 1 : i32
        %48 = arith.muli %arg9, %c1_i32_26 : i32
        %c0_i32_27 = arith.constant 0 : i32
        %49 = arith.addi %c0_i32_27, %48 : i32
        %50 = arith.addi %46, %49 : i32
        %51 = arith.index_cast %50 : i32 to index
        %52 = memref.load %arg2[%51] : memref<16xi32, #tpu.memory_space<smem>>
        %c0_i32_28 = arith.constant 0 : i32
        %53 = arith.addi %c0_i32_28, %49 : i32
        %c0_i32_29 = arith.constant 0 : i32
        %c0_i32_30 = arith.constant 0 : i32
        %54 = tpu.memref_slice %arg5[%52, %c0_i32_30] : memref<128x32xf32, #tpu.memory_space<any>> -> memref<1x32xf32, #tpu.memory_space<any>>
        %55 = tpu.memref_squeeze %54 : memref<1x32xf32, #tpu.memory_space<any>> -> memref<32xf32, #tpu.memory_space<any>>
        %c0_i32_31 = arith.constant 0 : i32
        %56 = tpu.memref_slice %arg7[%53, %c0_i32_31] : memref<16x32xf32, #tpu.memory_space<vmem>> -> memref<1x32xf32, #tpu.memory_space<vmem>>
        %57 = tpu.memref_squeeze %56 : memref<1x32xf32, #tpu.memory_space<vmem>> -> memref<32xf32, #tpu.memory_space<vmem>>
        %58 = tpu.memref_slice %arg8[%c0_i32_29] : memref<2x!tpu.dma_semaphore, #tpu.memory_space<semaphore_mem>> -> memref<1x!tpu.dma_semaphore, #tpu.memory_space<semaphore_mem>>
        %59 = tpu.memref_squeeze %58 : memref<1x!tpu.dma_semaphore, #tpu.memory_space<semaphore_mem>> -> memref<!tpu.dma_semaphore, #tpu.memory_space<semaphore_mem>>
        tpu.enqueue_dma source(%55 : memref<32xf32, #tpu.memory_space<any>>) target(%57 : memref<32xf32, #tpu.memory_space<vmem>>) target_semaphore(%59 : memref<!tpu.dma_semaphore, #tpu.memory_space<semaphore_mem>>)
      }
      %c8_i32_25 = arith.constant 8 : i32
    } else {
    }
    %c1_i32_1 = arith.constant 1 : i32
    %4 = arith.addi %arg1, %c1_i32_1 : i32
    %c1_i32_2 = arith.constant 1 : i32
    %5 = arith.cmpi slt, %4, %c1_i32_2 : i32
    %6 = arith.extui %5 : i1 to i32
    %c0_i32_3 = arith.constant 0 : i32
    %7 = arith.cmpi ne, %6, %c0_i32_3 : i32
    scf.if %7 {
      %c1_i32_20 = arith.constant 1 : i32
      %45 = arith.muli %arg0, %c1_i32_20 : i32
      %46 = arith.addi %45, %arg1 : i32
      %c1_i32_21 = arith.constant 1 : i32
      %47 = arith.addi %46, %c1_i32_21 : i32
      %c1_i32_22 = arith.constant 1 : i32
      %48 = arith.addi %arg1, %c1_i32_22 : i32
      %c1_i32_23 = arith.constant 1 : i32
      %49 = arith.andi %48, %c1_i32_23 : i32
      %c8_i32_24 = arith.constant 8 : i32
      %50 = arith.muli %47, %c8_i32_24 : i32
      %c8_i32_25 = arith.constant 8 : i32
      %51 = arith.muli %49, %c8_i32_25 : i32
      %c0_i32_26 = arith.constant 0 : i32
      %c8_i32_27 = arith.constant 8 : i32
      %52 = arith.addi %c0_i32_26, %c8_i32_27 : i32
      %c1_i32_28 = arith.constant 1 : i32
      scf.for %arg9 = %c0_i32_26 to %52 step %c1_i32_28  : i32 {
        %c1_i32_30 = arith.constant 1 : i32
        %53 = arith.muli %arg9, %c1_i32_30 : i32
        %c0_i32_31 = arith.constant 0 : i32
        %54 = arith.addi %c0_i32_31, %53 : i32
        %55 = arith.addi %50, %54 : i32
        %56 = arith.index_cast %55 : i32 to index
        %57 = memref.load %arg2[%56] : memref<16xi32, #tpu.memory_space<smem>>
        %58 = arith.addi %51, %54 : i32
        %c0_i32_32 = arith.constant 0 : i32
        %59 = tpu.memref_slice %arg5[%57, %c0_i32_32] : memref<128x32xf32, #tpu.memory_space<any>> -> memref<1x32xf32, #tpu.memory_space<any>>
        %60 = tpu.memref_squeeze %59 : memref<1x32xf32, #tpu.memory_space<any>> -> memref<32xf32, #tpu.memory_space<any>>
        %c0_i32_33 = arith.constant 0 : i32
        %61 = tpu.memref_slice %arg7[%58, %c0_i32_33] : memref<16x32xf32, #tpu.memory_space<vmem>> -> memref<1x32xf32, #tpu.memory_space<vmem>>
        %62 = tpu.memref_squeeze %61 : memref<1x32xf32, #tpu.memory_space<vmem>> -> memref<32xf32, #tpu.memory_space<vmem>>
        %63 = tpu.memref_slice %arg8[%49] : memref<2x!tpu.dma_semaphore, #tpu.memory_space<semaphore_mem>> -> memref<1x!tpu.dma_semaphore, #tpu.memory_space<semaphore_mem>>
        %64 = tpu.memref_squeeze %63 : memref<1x!tpu.dma_semaphore, #tpu.memory_space<semaphore_mem>> -> memref<!tpu.dma_semaphore, #tpu.memory_space<semaphore_mem>>
        tpu.enqueue_dma source(%60 : memref<32xf32, #tpu.memory_space<any>>) target(%62 : memref<32xf32, #tpu.memory_space<vmem>>) target_semaphore(%64 : memref<!tpu.dma_semaphore, #tpu.memory_space<semaphore_mem>>)
      }
      %c8_i32_29 = arith.constant 8 : i32
    } else {
    }
    %c8_i32 = arith.constant 8 : i32
    %8 = arith.muli %0, %c8_i32 : i32
    %9 = tpu.assume_multiple %8, 8 : i32
    %c0_i32_4 = arith.constant 0 : i32
    %c0_i32_5 = arith.constant 0 : i32
    %10 = tpu.memref_slice %arg5[%c0_i32_4, %c0_i32_5] : memref<128x32xf32, #tpu.memory_space<any>> -> memref<8x32xf32, #tpu.memory_space<any>>
    %c0_i32_6 = arith.constant 0 : i32
    %11 = tpu.memref_slice %arg7[%9, %c0_i32_6] : memref<16x32xf32, #tpu.memory_space<vmem>> -> memref<8x32xf32, #tpu.memory_space<vmem>>
    %12 = tpu.memref_slice %arg8[%0] : memref<2x!tpu.dma_semaphore, #tpu.memory_space<semaphore_mem>> -> memref<1x!tpu.dma_semaphore, #tpu.memory_space<semaphore_mem>>
    %13 = tpu.memref_squeeze %12 : memref<1x!tpu.dma_semaphore, #tpu.memory_space<semaphore_mem>> -> memref<!tpu.dma_semaphore, #tpu.memory_space<semaphore_mem>>
    tpu.wait_dma2 semaphore(%13 : memref<!tpu.dma_semaphore, #tpu.memory_space<semaphore_mem>>) src(%10 : memref<8x32xf32, #tpu.memory_space<any>>) dst(%11 : memref<8x32xf32, #tpu.memory_space<vmem>>)
    %c8_i32_7 = arith.constant 8 : i32
    %14 = arith.muli %0, %c8_i32_7 : i32
    %15 = tpu.assume_multiple %14, 8 : i32
    %16 = arith.index_cast %15 : i32 to index
    %c0 = arith.constant 0 : index
    %17 = vector.load %arg7[%16, %c0] : memref<16x32xf32, #tpu.memory_space<vmem>>, vector<8x32xf32>
    %cst = arith.constant dense<0.000000e+00> : vector<8xf32>
    %18 = vector.multi_reduction <add>, %17, %cst [1] : vector<8x32xf32> to vector<8xf32>
    %19 = vector.shape_cast %18 : vector<8xf32> to vector<8x1xf32>
    %cst_8 = arith.constant 3.200000e+01 : f32
    %20 = vector.broadcast %cst_8 : f32 to vector<8x1xf32>
    %21 = arith.divf %19, %20 : vector<8x1xf32>
    %22 = arith.mulf %17, %17 : vector<8x32xf32>
    %cst_9 = arith.constant dense<0.000000e+00> : vector<8xf32>
    %23 = vector.multi_reduction <add>, %22, %cst_9 [1] : vector<8x32xf32> to vector<8xf32>
    %24 = vector.shape_cast %23 : vector<8xf32> to vector<8x1xf32>
    %cst_10 = arith.constant 3.200000e+01 : f32
    %25 = vector.broadcast %cst_10 : f32 to vector<8x1xf32>
    %26 = arith.divf %24, %25 : vector<8x1xf32>
    %27 = arith.mulf %21, %21 : vector<8x1xf32>
    %28 = arith.subf %26, %27 : vector<8x1xf32>
    %29 = vector.broadcast %21 : vector<8x1xf32> to vector<8x32xf32>
    %30 = arith.subf %17, %29 : vector<8x32xf32>
    %cst_11 = arith.constant 9.99999974E-6 : f32
    %31 = vector.broadcast %cst_11 : f32 to vector<8x1xf32>
    %32 = arith.addf %28, %31 : vector<8x1xf32>
    %33 = math.rsqrt %32 : vector<8x1xf32>
    %34 = vector.broadcast %33 : vector<8x1xf32> to vector<8x32xf32>
    %35 = arith.mulf %30, %34 : vector<8x32xf32>
    %c0_12 = arith.constant 0 : index
    %c0_13 = arith.constant 0 : index
    %36 = vector.load %arg3[%c0_12, %c0_13] : memref<1x32xf32, #tpu.memory_space<vmem>>, vector<1x32xf32>
    %37 = vector.broadcast %36 : vector<1x32xf32> to vector<8x32xf32>
    %38 = arith.mulf %35, %37 : vector<8x32xf32>
    %c0_14 = arith.constant 0 : index
    %c0_15 = arith.constant 0 : index
    %39 = vector.load %arg4[%c0_14, %c0_15] : memref<1x32xf32, #tpu.memory_space<vmem>>, vector<1x32xf32>
    %40 = vector.broadcast %39 : vector<1x32xf32> to vector<8x32xf32>
    %41 = arith.addf %38, %40 : vector<8x32xf32>
    %c0_16 = arith.constant 0 : index
    %c0_17 = arith.constant 0 : index
    %42 = vector.load %arg6[%c0_16, %c0_17] : memref<8x64xf32, #tpu.memory_space<vmem>>, vector<8x32xf32>
    tpu.vector_store %arg6[%c0_16, %c0_17], %41 {strides = array<i32>} : memref<8x64xf32, #tpu.memory_space<vmem>>, vector<8x32xf32>,
    %cst_18 = arith.constant 0.000000e+00 : f32
    %43 = vector.broadcast %cst_18 : f32 to vector<8x32xf32>
    %c0_19 = arith.constant 0 : index
    %c32 = arith.constant 32 : index
    %44 = vector.load %arg6[%c0_19, %c32] : memref<8x64xf32, #tpu.memory_space<vmem>>, vector<8x32xf32>
    tpu.vector_store %arg6[%c0_19, %c32], %43 {strides = array<i32>} : memref<8x64xf32, #tpu.memory_space<vmem>>, vector<8x32xf32>,
    return
  }
  func.func @transform_0(%arg0: i32, %arg1: i32, %arg2: memref<16xi32, #tpu.memory_space<smem>>) -> (i32, i32) {
    %c0_i32 = arith.constant 0 : i32
    %c0_i32_0 = arith.constant 0 : i32
    %c0_i32_1 = arith.constant 0 : i32
    return %c0_i32, %c0_i32_0 : i32, i32
  }
  func.func @transform_1(%arg0: i32, %arg1: i32, %arg2: memref<16xi32, #tpu.memory_space<smem>>) -> (i32, i32) {
    %c0_i32 = arith.constant 0 : i32
    %c0_i32_0 = arith.constant 0 : i32
    %c0_i32_1 = arith.constant 0 : i32
    return %c0_i32, %c0_i32_0 : i32, i32
  }
  func.func @transform_3(%arg0: i32, %arg1: i32, %arg2: memref<16xi32, #tpu.memory_space<smem>>) -> (i32, i32) {
    %c1_i32 = arith.constant 1 : i32
    %0 = arith.muli %arg0, %c1_i32 : i32
    %1 = arith.addi %0, %arg1 : i32
    %c0_i32 = arith.constant 0 : i32
    %c0_i32_0 = arith.constant 0 : i32
    return %1, %c0_i32 : i32, i32
  }
}

</mosaic_0001>

<llo_original>
// kernel: tpu_custom_call.1
$region0: #{tpu_custom_call.1}
  #allocation0 [shape = 'u32[]', space=smem, size = 0x4, offset = 0x4, fixed_abs, tag = 'smem constant byte address 0x4 - core index']
  #allocation1 [shape = 'u32[144,128]{1,0:T(1,128)}', space=vmem, size = 0x12000, scoped, tag = 'internal scratch']
  #allocation2 [shape = 'f32[16,32]{1,0:T(8,128)}', space=vmem, size = 0x2000, scoped, tag = 'scratch operand']
  #allocation3 [shape = 's32[2]{0}', space=sflag, size = 0x8, scoped, tag = 'scratch operand']
  #allocation4 [shape = 's32[1]{0}', space=sflag, size = 0x4, scoped, tag = 'scoped memory for tpu_custom_call.1']
  #allocation5 [shape = 'u8[512]{0}', space=smem, size = 0x200, scoped, tag = 'prefetched SMEM operand 0']
  #allocation8 [shape = 's32[]', space=sflag, size = 0x4, offset = 0, fixed_abs, tag = 'sflag constant byte address 0x0 - dummy sync flag']
  #allocation9 [shape = 's32[]', space=sflag, size = 0x4, offset = 0, fixed_abs, tag = 'sflag constant byte address 0x0 - dummy sync flag']
  %s0 = inlined_call_operand.vmem [shape: s32[16], index: 0, kind: input, shape index: {}]
  %s1 = inlined_call_operand.vmem [shape: f32[1,32], index: 1, kind: input, shape index: {}]
  %s2 = inlined_call_operand.vmem [shape: f32[1,32], index: 2, kind: input, shape index: {}]
  %s3 = inlined_call_operand.vmem [shape: f32[128,32], index: 3, kind: input, shape index: {}]
  %s4 = inlined_call_operand.hbm [shape: f32[16,64], index: 4, kind: output, shape index: {}]
  %s5 = sld [smem:[#allocation0]]
  $region123: #{tpu_custom_call.1} parent=0
    _
  %s7 = ssub.s32 1, %s5
  %s8 = scalar_select 0, %s7, %s5
  %s9 = sshll.u32 %s0, 4
  %s10 = int_to_ptr.vmem [resolvable:$true] %s9
  %12 = dma.vmem_to_smem %s10, 16, [#allocation5], [#allocation4]
  %13 = dma.done [#allocation4], 16
  %14 = sfence
  $region1: #{tpu_custom_call.1} parent=0
    #allocation6 [shape = 'u8[8192]{0}', space=vmem, size = 0x2000, scoped, tag = 'output window, operand 0']
    #allocation7 [shape = 's32[2]{0}', space=sflag, size = 0x8, scoped, tag = 'scoped memory for tpu_custom_call.1']
    %15 = vsyncpa [#allocation7], 0
    %s16 = scalar_lea.sflag [#allocation7], 1
    %17 = vsyncpa %s16, 0
    loop: start=0, step=1, limit=4
    $region2: #{tpu_custom_call.1} parent=1 // loop_pre_header
      _
    $region3: #{tpu_custom_call.1} parent=1 // loop_header
      %s19 = sphi 0, %s23
      %p20 = scmp.ge.s32.totalorder %s19, 4
      %s26 = sphi 0, %s38
      %s27 = sphi 0, %s34
      %s28 = sphi 0, %s26
      %s29 = sphi 0, %s27
      %s30 = sphi 0, %s28
      %s31 = sphi 0, %s29
      %s39 = sphi 0, %s39
      %s41 = sphi 0, %s39
      %s42 = sphi 0, %s41
      %s56 = sphi 0, %s42
      %s60 = sphi 0, %s60
      %s62 = sphi 0, %s60
      %s63 = sphi 0, %s62
      %s77 = sphi 0, %s63
      %s85 = sphi 0, %s87
      %s88 = sphi 0, %s85
      %s89 = sphi 0, %s88
      %s105 = sphi 0, %s89
    $region4: #{tpu_custom_call.1} parent=1 // loop_header_branch
      %22 = sbr.rel (%p20) target = $region8
    $region5: #{tpu_custom_call.1} parent=1 // loop_body
      %s24 = ssub.s32 %s19, 1
      %s25 = ssub.s32 %s19, 2
      %s32 = sadd.s32 1, %s27
      %p33 = scmp.ge.s32.totalorder %s32, 1
      %s34 = scalar_select %p33, 0, %s32
      %s35 = sadd.s32 1, %s26
      %s36 = scalar_select %p33, %s35, %s26
      %p37 = scmp.ge.s32.totalorder %s36, 2
      %s38 = scalar_select %p37, 0, %s36
      %s40 = sadd.s32 %s39, 1
      %p43 = scmp.eq.s32.totalorder %s19, 1
      %p44 = scmp.ne.s32.totalorder %s39, %s41
      %p45 = scmp.eq.s32.totalorder %s19, 0
      %p46 = por %p44, %p45
      %p47 = scmp.ne.s32.totalorder %s39, %s41
      %p48 = scmp.eq.s32.totalorder %s24, 1
      %p49 = por %p47, %p48
      %p50 = scmp.ne.s32.totalorder %s41, %s42
      %p51 = scmp.eq.s32.totalorder %s24, 0
      %p52 = por %p50, %p51
      %p53 = scmp.ne.s32.totalorder %s41, %s42
      %p54 = scmp.eq.s32.totalorder %s25, 1
      %p55 = por %p53, %p54
      %p57 = scmp.ne.s32.totalorder %s42, %s56
      %p58 = scmp.eq.s32.totalorder %s25, 0
      %p59 = por %p57, %p58
      %s61 = sadd.s32 %s60, 1
      %p64 = scmp.eq.s32.totalorder %s19, 1
      %p65 = scmp.ne.s32.totalorder %s60, %s62
      %p66 = scmp.eq.s32.totalorder %s19, 0
      %p67 = por %p65, %p66
      %p68 = scmp.ne.s32.totalorder %s60, %s62
      %p69 = scmp.eq.s32.totalorder %s24, 1
      %p70 = por %p68, %p69
      %p71 = scmp.ne.s32.totalorder %s62, %s63
      %p72 = scmp.eq.s32.totalorder %s24, 0
      %p73 = por %p71, %p72
      %p74 = scmp.ne.s32.totalorder %s62, %s63
      %p75 = scmp.eq.s32.totalorder %s25, 1
      %p76 = por %p74, %p75
      %p78 = scmp.ne.s32.totalorder %s63, %s77
      %p79 = scmp.eq.s32.totalorder %s25, 0
      %p80 = por %p78, %p79
      %s81 = sadd.s32 %s26, %s27
      %s82 = sadd.s32 %s38, %s34
      %s83 = ssub.s32 %s81, %s82
      %p84 = scmp.eq.s32.totalorder %s83, 0
      %s86 = sadd.s32 %s85, 1
      %s87 = scalar_select %p84, %s85, %s86
      %p90 = pneg %p84
      %p91 = scmp.eq.s32.totalorder %s19, 1
      %p92 = por %p90, %p91
      %p93 = scmp.ne.s32.totalorder %s85, %s88
      %p94 = scmp.eq.s32.totalorder %s19, 0
      %p95 = por %p93, %p94
      %p96 = scmp.ne.s32.totalorder %s85, %s88
      %p97 = scmp.eq.s32.totalorder %s24, 1
      %p98 = por %p96, %p97
      %p99 = scmp.ne.s32.totalorder %s88, %s89
      %p100 = scmp.eq.s32.totalorder %s24, 0
      %p101 = por %p99, %p100
      %p102 = scmp.ne.s32.totalorder %s88, %s89
      %p103 = scmp.eq.s32.totalorder %s25, 1
      %p104 = por %p102, %p103
      %p106 = scmp.ne.s32.totalorder %s89, %s105
      %p107 = scmp.eq.s32.totalorder %s25, 0
      %p108 = por %p106, %p107
      %p109 = scmp.le.s32.totalorder 1, %s19
      %p110 = scmp.lt.s32.totalorder %s19, 3
      %p111 = pnand %p109, %p110
      %p112 = pneg %p111
      // Predicated region
      $region9: #{tpu_custom_call.1} parent=5 // pred_check
        _
      $region10: #{tpu_custom_call.1} parent=5 // pred_check_branch
        %114 = sbr.rel (%p111) target = $region12
      $region11: #{tpu_custom_call.1} parent=5 // pred_region
        %s115 = ssub.s32 %s19, 1
        // Predicated region
        $region13: #{tpu_custom_call.1} parent=11 // pred_check
          %p116 = pneg %p52
        $region14: #{tpu_custom_call.1} parent=11 // pred_check_branch
          %118 = sbr.rel (%p116) target = $region16
        $region15: #{tpu_custom_call.1} parent=11 // pred_region
          _
        $region16: #{tpu_custom_call.1} parent=11 // pred_fallthru
          _
        // Predicated region
        $region17: #{tpu_custom_call.1} parent=11 // pred_check
          %p119 = pneg %p73
        $region18: #{tpu_custom_call.1} parent=11 // pred_check_branch
          %121 = sbr.rel (%p119) target = $region20
        $region19: #{tpu_custom_call.1} parent=11 // pred_region
          _
        $region20: #{tpu_custom_call.1} parent=11 // pred_fallthru
          _
      $region12: #{tpu_custom_call.1} parent=5 // pred_fallthru
        _
      %p122 = scmp.lt.s32.totalorder %s19, 2
      // Predicated region
      $region21: #{tpu_custom_call.1} parent=5 // pred_check
        %p123 = pneg %p122
      $region22: #{tpu_custom_call.1} parent=5 // pred_check_branch
        %125 = sbr.rel (%p123) target = $region24
      $region23: #{tpu_custom_call.1} parent=5 // pred_region
        _
      $region24: #{tpu_custom_call.1} parent=5 // pred_fallthru
        _
      %p126 = scmp.le.s32.totalorder 1, %s19
      %p127 = scmp.lt.s32.totalorder %s19, 3
      %p128 = pnand %p126, %p127
      %p129 = pneg %p128
      // Predicated region
      $region25: #{tpu_custom_call.1} parent=5 // pred_check
        _
      $region26: #{tpu_custom_call.1} parent=5 // pred_check_branch
        %131 = sbr.rel (%p128) target = $region28
      $region27: #{tpu_custom_call.1} parent=5 // pred_region
        %s132 = ssub.s32 %s19, 1
        %p133 = pneg %p52
        %p134 = pneg %p49
        %p135 = pneg %p73
        %p136 = pneg %p70
        %p137 = pneg %p101
        %p138 = pneg %p98
        %s139 = sand.u32 %s88, 1
        %s140 = scalar_lea.sflag [#allocation7], %s139
        %s141 = sand.u32 %s88, 1
        %s142 = smul.addr %s141, 8
        %s143 = scalar_lea.vmem [#allocation6], %s142
        %s144 = sadd.s32 %s28, %s29
        %s145 = sand.u32 %s29, 1
        %p146 = scmp.eq.s32.totalorder %s29, 0
        // Predicated region
        $region29: #{tpu_custom_call.1} parent=27 // pred_check
          %p147 = pneg %p146
        $region30: #{tpu_custom_call.1} parent=27 // pred_check_branch
          %149 = sbr.rel (%p147) target = $region32
        $region31: #{tpu_custom_call.1} parent=27 // pred_region
          %s150 = smul.u32 %s28, 8
          loop: start=0, step=1, limit=8
          $region33: #{tpu_custom_call.1} parent=31 // loop_pre_header
            _
          $region34: #{tpu_custom_call.1} parent=31 // loop_header
            %s152 = sphi 0, %s156
            %p153 = scmp.ge.s32.totalorder %s152, 8
          $region35: #{tpu_custom_call.1} parent=31 // loop_header_branch
            %155 = sbr.rel (%p153) target = $region39
          $region36: #{tpu_custom_call.1} parent=31 // loop_body
            %s157 = sadd.s32 %s150, %s152
            %s158 = sld [smem:[#allocation5 + %s157]]
            %s159 = scalar_lea.vmem %s3, %s158
            %s160 = scalar_lea.vmem [#allocation2], %s152
            %p162 = scmp.lt.u32.totalorder 1, 8
            %p163 = pneg %p162
            // Predicated region
            $region40: #{tpu_custom_call.1} parent=36 // pred_check
              _
            $region41: #{tpu_custom_call.1} parent=36 // pred_check_branch
              %165 = sbr.rel (%p162) target = $region43
            $region42: #{tpu_custom_call.1} parent=36 // pred_region
              %s180 = sand.u32 1, 7
              %p181 = scmp.eq.s32.totalorder %s180, 0
              %p182 = pneg %p181
              // Predicated region
              $region55: #{tpu_custom_call.1} parent=42 // pred_check
                _
              $region56: #{tpu_custom_call.1} parent=42 // pred_check_branch
                %184 = sbr.rel (%p181) target = $region58
              $region57: #{tpu_custom_call.1} parent=42 // pred_region
                %s185 = sand.u32 1, 7
                %s186 = ssub.s32 1, %s185
                %s187 = scalar_lea.vmem %s159, %s186
                %s188 = ssub.s32 1, %s185
                %s189 = scalar_lea.vmem %s160, %s188 [#allocation2]
                %s190 = sshllo.u32 0, %s185
                loop: start=0, step=1, limit=1
                $region59: #{tpu_custom_call.1} parent=57 // loop_pre_header
                  _
                $region60: #{tpu_custom_call.1} parent=57 // loop_header
                  %s192 = sphi 0, %s196
                  %p193 = scmp.ge.s32.totalorder %s192, 1
                  %s197 = sphi %s187, %s187
                  %s198 = sphi %s189, %s189
                $region61: #{tpu_custom_call.1} parent=57 // loop_header_branch
                  %195 = sbr.rel (%p193) target = $region65
                $region62: #{tpu_custom_call.1} parent=57 // loop_body
                  %v199 = vld [vmem:[%s197] sm:%s190]
                  %200 = vst [vmem:[%s198] sm:%s190] %v199
                $region63: #{tpu_custom_call.1} parent=57 // loop_footer
                  %s196 = sadd.s32 1, %s192
                $region64: #{tpu_custom_call.1} parent=57 // loop_footer_branch
                  %191 = sbr.rel target = $region60
                $region65: #{tpu_custom_call.1} parent=57 // loop_exit
                  _
              $region58: #{tpu_custom_call.1} parent=42 // pred_fallthru
                _
            $region43: #{tpu_custom_call.1} parent=36 // pred_fallthru
              _
            // Predicated region
            $region44: #{tpu_custom_call.1} parent=36 // pred_check
              %p166 = pneg %p162
            $region45: #{tpu_custom_call.1} parent=36 // pred_check_branch
              %168 = sbr.rel (%p166) target = $region47
            $region46: #{tpu_custom_call.1} parent=36 // pred_region
              %s169 = sshllo.u32 0, 1
              loop: start=0, step=1, limit=1
              $region48: #{tpu_custom_call.1} parent=46 // loop_pre_header
                _
              $region49: #{tpu_custom_call.1} parent=46 // loop_header
                %s171 = sphi 0, %s175
                %p172 = scmp.ge.s32.totalorder %s171, 1
                %s176 = sphi %s159, %s159
                %s177 = sphi %s160, %s160
              $region50: #{tpu_custom_call.1} parent=46 // loop_header_branch
                %174 = sbr.rel (%p172) target = $region54
              $region51: #{tpu_custom_call.1} parent=46 // loop_body
                %v178 = vld [vmem:[%s176] sm:%s169]
                %179 = vst [vmem:[%s177] sm:%s169] %v178
              $region52: #{tpu_custom_call.1} parent=46 // loop_footer
                %s175 = sadd.s32 1, %s171
              $region53: #{tpu_custom_call.1} parent=46 // loop_footer_branch
                %170 = sbr.rel target = $region49
              $region54: #{tpu_custom_call.1} parent=46 // loop_exit
                _
            $region47: #{tpu_custom_call.1} parent=36 // pred_fallthru
              _
            // Predicated region
            $region66: #{tpu_custom_call.1} parent=36 // pred_check
              _
            $region67: #{tpu_custom_call.1} parent=36 // pred_check_branch
              %203 = sbr.rel (0) target = $region69
            $region68: #{tpu_custom_call.1} parent=36 // pred_region
              %204 = vsyncadd [#allocation3], 16
            $region69: #{tpu_custom_call.1} parent=36 // pred_fallthru
              _
          $region37: #{tpu_custom_call.1} parent=31 // loop_footer
            %s156 = sadd.s32 1, %s152
          $region38: #{tpu_custom_call.1} parent=31 // loop_footer_branch
            %151 = sbr.rel target = $region34
          $region39: #{tpu_custom_call.1} parent=31 // loop_exit
            _
        $region32: #{tpu_custom_call.1} parent=27 // pred_fallthru
          _
        %s205 = sadd.s32 %s29, 1
        %p206 = scmp.lt.s32.totalorder %s205, 1
        // Predicated region
        $region70: #{tpu_custom_call.1} parent=27 // pred_check
          %p207 = pneg %p206
        $region71: #{tpu_custom_call.1} parent=27 // pred_check_branch
          %209 = sbr.rel (%p207) target = $region73
        $region72: #{tpu_custom_call.1} parent=27 // pred_region
          %s210 = sadd.s32 %s28, %s29
          %s211 = sadd.s32 %s210, 1
          %s212 = sand.u32 %s205, 1
          %s213 = smul.u32 %s211, 8
          %s214 = smul.u32 %s212, 8
          loop: start=0, step=1, limit=8
          $region74: #{tpu_custom_call.1} parent=72 // loop_pre_header
            _
          $region75: #{tpu_custom_call.1} parent=72 // loop_header
            %s216 = sphi 0, %s220
            %p217 = scmp.ge.s32.totalorder %s216, 8
          $region76: #{tpu_custom_call.1} parent=72 // loop_header_branch
            %219 = sbr.rel (%p217) target = $region80
          $region77: #{tpu_custom_call.1} parent=72 // loop_body
            %s221 = sadd.s32 %s213, %s216
            %s222 = sld [smem:[#allocation5 + %s221]]
            %s223 = sadd.s32 %s214, %s216
            %s224 = scalar_lea.vmem %s3, %s222
            %s225 = scalar_lea.vmem [#allocation2], %s223
            %s226 = scalar_lea.sflag [#allocation3], %s212
            %p228 = scmp.lt.u32.totalorder 1, 8
            %p229 = pneg %p228
            // Predicated region
            $region81: #{tpu_custom_call.1} parent=77 // pred_check
              _
            $region82: #{tpu_custom_call.1} parent=77 // pred_check_branch
              %231 = sbr.rel (%p228) target = $region84
            $region83: #{tpu_custom_call.1} parent=77 // pred_region
              %s246 = sand.u32 1, 7
              %p247 = scmp.eq.s32.totalorder %s246, 0
              %p248 = pneg %p247
              // Predicated region
              $region96: #{tpu_custom_call.1} parent=83 // pred_check
                _
              $region97: #{tpu_custom_call.1} parent=83 // pred_check_branch
                %250 = sbr.rel (%p247) target = $region99
              $region98: #{tpu_custom_call.1} parent=83 // pred_region
                %s251 = sand.u32 1, 7
                %s252 = ssub.s32 1, %s251
                %s253 = scalar_lea.vmem %s224, %s252
                %s254 = ssub.s32 1, %s251
                %s255 = scalar_lea.vmem %s225, %s254 [#allocation2]
                %s256 = sshllo.u32 0, %s251
                loop: start=0, step=1, limit=1
                $region100: #{tpu_custom_call.1} parent=98 // loop_pre_header
                  _
                $region101: #{tpu_custom_call.1} parent=98 // loop_header
                  %s258 = sphi 0, %s262
                  %p259 = scmp.ge.s32.totalorder %s258, 1
                  %s263 = sphi %s253, %s253
                  %s264 = sphi %s255, %s255
                $region102: #{tpu_custom_call.1} parent=98 // loop_header_branch
                  %261 = sbr.rel (%p259) target = $region106
                $region103: #{tpu_custom_call.1} parent=98 // loop_body
                  %v265 = vld [vmem:[%s263] sm:%s256]
                  %266 = vst [vmem:[%s264] sm:%s256] %v265
                $region104: #{tpu_custom_call.1} parent=98 // loop_footer
                  %s262 = sadd.s32 1, %s258
                $region105: #{tpu_custom_call.1} parent=98 // loop_footer_branch
                  %257 = sbr.rel target = $region101
                $region106: #{tpu_custom_call.1} parent=98 // loop_exit
                  _
              $region99: #{tpu_custom_call.1} parent=83 // pred_fallthru
                _
            $region84: #{tpu_custom_call.1} parent=77 // pred_fallthru
              _
            // Predicated region
            $region85: #{tpu_custom_call.1} parent=77 // pred_check
              %p232 = pneg %p228
            $region86: #{tpu_custom_call.1} parent=77 // pred_check_branch
              %234 = sbr.rel (%p232) target = $region88
            $region87: #{tpu_custom_call.1} parent=77 // pred_region
              %s235 = sshllo.u32 0, 1
              loop: start=0, step=1, limit=1
              $region89: #{tpu_custom_call.1} parent=87 // loop_pre_header
                _
              $region90: #{tpu_custom_call.1} parent=87 // loop_header
                %s237 = sphi 0, %s241
                %p238 = scmp.ge.s32.totalorder %s237, 1
                %s242 = sphi %s224, %s224
                %s243 = sphi %s225, %s225
              $region91: #{tpu_custom_call.1} parent=87 // loop_header_branch
                %240 = sbr.rel (%p238) target = $region95
              $region92: #{tpu_custom_call.1} parent=87 // loop_body
                %v244 = vld [vmem:[%s242] sm:%s235]
                %245 = vst [vmem:[%s243] sm:%s235] %v244
              $region93: #{tpu_custom_call.1} parent=87 // loop_footer
                %s241 = sadd.s32 1, %s237
              $region94: #{tpu_custom_call.1} parent=87 // loop_footer_branch
                %236 = sbr.rel target = $region90
              $region95: #{tpu_custom_call.1} parent=87 // loop_exit
                _
            $region88: #{tpu_custom_call.1} parent=77 // pred_fallthru
              _
            // Predicated region
            $region107: #{tpu_custom_call.1} parent=77 // pred_check
              _
            $region108: #{tpu_custom_call.1} parent=77 // pred_check_branch
              %269 = sbr.rel (0) target = $region110
            $region109: #{tpu_custom_call.1} parent=77 // pred_region
              %270 = vsyncadd %s226, 16
            $region110: #{tpu_custom_call.1} parent=77 // pred_fallthru
              _
          $region78: #{tpu_custom_call.1} parent=72 // loop_footer
            %s220 = sadd.s32 1, %s216
          $region79: #{tpu_custom_call.1} parent=72 // loop_footer_branch
            %215 = sbr.rel target = $region75
          $region80: #{tpu_custom_call.1} parent=72 // loop_exit
            _
        $region73: #{tpu_custom_call.1} parent=27 // pred_fallthru
          _
        %s271 = smul.u32 %s145, 8
        %s272 = scalar_lea.sflag [#allocation3], %s145
        %s273 = smul.u32 8, 1
        %s274 = sshll.u32 %s273, 4
        %275 = dma.done %s272, %s274
        %s276 = scalar_lea.vmem [#allocation2], %s271
        %v277 = vld [vmem:[%s276] sm:$0xff]
        %vm278 = vcmask 261120
        %v279 = vsel %vm278, %v277, 0.0
        %280 = vadd.xlane.f32.xlu0 %v279
        %v281 = vpop.xlane.xlu0 %280
        %v282 = vrcp.pop 32.0
        %v283 = vmul.f32 %v281, %v282
        %v284 = vmul.f32 %v277, %v277
        %v285 = vsel %vm278, %v284, 0.0
        %286 = vadd.xlane.f32.xlu0 %v285
        %v287 = vpop.xlane.xlu0 %286
        %v288 = vmul.f32 %v287, %v282
        %v289 = vmul.f32 %v283, %v283
        %v290 = vsub.f32 %v288, %v289
        %v291 = vsub.f32 %v277, %v283
        %v292 = vadd.f32 %v290, 1e-05
        %v293 = vrsqrt.pop %v292
        %v294 = vmul.f32 %v291, %v293
        %v295 = vld [vmem:[%s1] sm:$0x1]
        %v297 = vlaneseq
        %v298 = vshrl.u32 %v297, 7
        %v299 = vsub.s32 0, %v298
        %v300 = vrot.slane %v295, %v299
        %v302 = vmul.f32 %v294, %v300
        %v303 = vld [vmem:[%s2] sm:$0x1]
        %v305 = vlaneseq
        %v306 = vshrl.u32 %v305, 7
        %v307 = vsub.s32 0, %v306
        %v308 = vrot.slane %v303, %v307
        %v310 = vadd.f32 %v302, %v308
        %311 = vst.msk [vmem:[%s143] sm:$0xff] %vm278, %v310
        %vm312 = vcmask 523520
        %313 = vst.msk [vmem:[%s143] sm:$0xff] %vm312, 0.0
        %s314 = sand.u32 %s88, 1
        %s315 = scalar_lea.sflag [#allocation7], %s314
        %s316 = sand.u32 %s88, 1
        %s317 = smul.addr %s316, 8
        %s318 = scalar_lea.vmem [#allocation6], %s317
        // Predicated region
        $region111: #{tpu_custom_call.1} parent=27 // pred_check
          %p319 = pneg %p98
        $region112: #{tpu_custom_call.1} parent=27 // pred_check_branch
          %321 = sbr.rel (%p319) target = $region114
        $region113: #{tpu_custom_call.1} parent=27 // pred_region
          %s322 = sadd.s32 %s28, %s29
          %s324 = ssub.s32 128, 128
          %325 = vsyncadd %s315, %s324
          %s326 = smul.addr %s322, 128
          %s327 = scalar_lea.hbm %s4, %s326
          %s329 = sshll.u32 %s318, 4
          %s330 = int_to_ptr.vmem [resolvable:$true] %s329
          %332 = dma.vmem_to_hbm [thread:$0]  %s330, 128, %s327, %s315
        $region114: #{tpu_custom_call.1} parent=27 // pred_fallthru
          _
      $region28: #{tpu_custom_call.1} parent=5 // pred_fallthru
        _
      %p333 = scmp.le.s32.totalorder 2, %s19
      // Predicated region
      $region115: #{tpu_custom_call.1} parent=5 // pred_check
        %p334 = pneg %p333
      $region116: #{tpu_custom_call.1} parent=5 // pred_check_branch
        %336 = sbr.rel (%p334) target = $region118
      $region117: #{tpu_custom_call.1} parent=5 // pred_region
        %s337 = ssub.s32 %s19, 2
        // Predicated region
        $region119: #{tpu_custom_call.1} parent=117 // pred_check
          %p338 = pneg %p104
        $region120: #{tpu_custom_call.1} parent=117 // pred_check_branch
          %340 = sbr.rel (%p338) target = $region122
        $region121: #{tpu_custom_call.1} parent=117 // pred_region
          %s341 = sand.u32 %s89, 1
          %s342 = scalar_lea.sflag [#allocation7], %s341
          %s343 = sand.u32 %s89, 1
          %s344 = smul.addr %s343, 8
          %s345 = scalar_lea.vmem [#allocation6], %s344
          %346 = dma.done %s342, 128
        $region122: #{tpu_custom_call.1} parent=117 // pred_fallthru
          _
      $region118: #{tpu_custom_call.1} parent=5 // pred_fallthru
        _
    $region6: #{tpu_custom_call.1} parent=1 // loop_footer
      %s23 = sadd.s32 1, %s19
    $region7: #{tpu_custom_call.1} parent=1 // loop_footer_branch
      %18 = sbr.rel target = $region3
    $region8: #{tpu_custom_call.1} parent=1 // loop_exit
      _
    %347 = vsyncpa [#allocation7], 1
    %s348 = scalar_lea.sflag [#allocation7], 1
    %349 = vsyncpa %s348, 1
  %350 = vsyncmov [#allocation3]
  %s351 = vpop.sfrf %350
  %p352 = scmp.eq.s32.totalorder %s351, 0
  %p353 = pneg %p352
  %355 = shalt.err (%p353)
  %s356 = scalar_lea.sflag [#allocation3], 1
  %357 = vsyncmov %s356
  %s358 = vpop.sfrf %357
  %p359 = scmp.eq.s32.totalorder %s358, 0
  %p360 = pneg %p359
  %362 = shalt.err (%p360)

</llo_original>
